<compile_context>
chip_gen: v6e
topology: v6e:2x2x1
jax: 0.10.0
libtpu: 0.0.40
codegen_flags: <defaults>
</compile_context>

<pallas_src>
import functools

import jax
import jax.numpy as jnp
from jax import lax
from jax.experimental import pallas as pl
from jax.experimental.pallas import tpu as pltpu

MARGIN = 1.0
EPS = 1e-6  # PyTorch pairwise_distance default eps (added elementwise to the diff)

# ~4 MiB per f32 input tile at D=128; amortizes the ~0.35 us/step pipeline cost.
_MAX_TILE_B = 8192


def _round_up(x, m):
    return ((x + m - 1) // m) * m


def _sublane_multiple(itemsize):
    # Native sublane tile: f32 -> 8 rows, bf16 -> 16, int8/fp8 -> 32.
    return max(8, 32 // int(itemsize))


def _default_vmem_limit():
    # Chip-aware scoped-VMEM target: half of physical VMEM, capped at 64 MiB.
    #   v5e / v6e (128 MiB physical) -> 64 MiB ; v7x (64 MiB per TC) -> 32 MiB.
    try:
        cap = int(pltpu.get_tpu_info().vmem_capacity_bytes)
        return min(cap // 2, 64 * 1024 * 1024)
    except Exception:
        return 32 * 1024 * 1024  # safe on every generation


def _auto_tile_b(batch, d, itemsize, vmem_limit_bytes):
    """Largest dtype-aligned batch tile that fits the double-buffer budget."""
    mult = _sublane_multiple(itemsize)
    budget = int(0.8 * vmem_limit_bytes)
    # 3 inputs x 2 pipeline buffers x TB x D x itemsize (output is negligible).
    tb = budget // max(1, 3 * 2 * d * itemsize)
    tb = max(mult, min(tb, _MAX_TILE_B))
    tb = min(tb, _round_up(batch, mult))      # no point tiling beyond the batch
    return max(mult, (tb // mult) * mult)


def _tile_hinge_sum(a_ref, p_ref, n_ref, batch, tile_b):
    """Sum over one batch tile of max(d(a,p) - d(a,n) + margin, 0), masked."""
    i = pl.program_id(0)

    # Upcast (supports bf16 / narrower storage in HBM) before eps / squared-sum.
    a = a_ref[...].astype(jnp.float32)
    p = p_ref[...].astype(jnp.float32)
    n = n_ref[...].astype(jnp.float32)

    # PyTorch semantics: d(x1, x2) = || x1 - x2 + eps ||_2 (eps added elementwise)
    dp = jnp.sqrt(jnp.sum((a - p + EPS) ** 2, axis=-1, keepdims=True))  # (TB, 1)
    dn = jnp.sqrt(jnp.sum((a - n + EPS) ** 2, axis=-1, keepdims=True))  # (TB, 1)

    hinge = jnp.maximum(dp - dn + MARGIN, 0.0)  # (TB, 1)

    # Mask rows of a ragged last tile (garbage-padded input rows).
    row = i * tile_b + lax.broadcasted_iota(jnp.int32, hinge.shape, 0)
    hinge = jnp.where(row < batch, hinge, 0.0)

    # Sublane reduce (XLU, which has slack) -> one f32 partial per tile.
    return jnp.sum(hinge, axis=0, keepdims=True)  # (1, 1)


def _triplet_acc_kernel(a_ref, p_ref, n_ref, o_ref, *, batch, tile_b, inv_b):
    """Serial grid: (1,1) output block is resident and used as the accumulator."""
    i = pl.program_id(0)

    @pl.when(i == 0)
    def _():
        o_ref[...] = jnp.zeros_like(o_ref)

    o_ref[...] += _tile_hinge_sum(a_ref, p_ref, n_ref, batch, tile_b)

    @pl.when(i == pl.num_programs(0) - 1)
    def _():
        o_ref[...] = o_ref[...] * inv_b  # reduction='mean' done in-kernel


def _triplet_partial_kernel(a_ref, p_ref, n_ref, o_ref, *, batch, tile_b):
    """CORE_PARALLEL grid: each step writes its partial to a disjoint (8,128) block."""
    s = _tile_hinge_sum(a_ref, p_ref, n_ref, batch, tile_b)  # (1, 1)
    o_ref[...] = jnp.broadcast_to(s, o_ref.shape)            # lane-dense unmasked store


def triplet_margin_loss(anchor, positive, negative, *, tile_b=None,
                        vmem_limit_bytes=None, core_parallel=False):
    """anchor/positive/negative: (B, D) embeddings (f32 or bf16). Scalar f32 loss.

    core_parallel=True is intended for v7x (2 TensorCores per chip): it emits
    per-tile partial sums to disjoint blocks under pltpu.CORE_PARALLEL so the
    batch grid is split across cores. The default path (core_parallel=False)
    uses an in-kernel accumulator, best on single-TC v5e / v6e.
    """
    assert anchor.shape == positive.shape == negative.shape
    assert anchor.ndim == 2
    B, D = anchor.shape
    itemsize = jnp.dtype(anchor.dtype).itemsize
    mult = _sublane_multiple(itemsize)

    if vmem_limit_bytes is None:
        vmem_limit_bytes = _default_vmem_limit()
    if tile_b is None:
        tile_b = _auto_tile_b(B, D, itemsize, vmem_limit_bytes)
    tile_b = int(tile_b)
    tile_b = max(mult, (min(tile_b, _round_up(B, mult)) // mult) * mult)
    grid_b = pl.cdiv(B, tile_b)

    cost = pl.CostEstimate(
        flops=9 * B * D + 6 * B,
        transcendentals=2 * B,                      # two sqrts per row
        bytes_accessed=3 * B * D * itemsize + 4 * 8 * 128 * max(grid_b, 1),
    )

    in_specs = [
        pl.BlockSpec((tile_b, D), lambda i: (i, 0)),
        pl.BlockSpec((tile_b, D), lambda i: (i, 0)),
        pl.BlockSpec((tile_b, D), lambda i: (i, 0)),
    ]

    if core_parallel:
        # v7x path: disjoint per-tile partials, batch axis sharded across TCs.
        kernel = functools.partial(_triplet_partial_kernel, batch=B, tile_b=tile_b)
        out = pl.pallas_call(
            kernel,
            out_shape=jax.ShapeDtypeStruct((grid_b * 8, 128), jnp.float32),
            grid_spec=pltpu.PrefetchScalarGridSpec(
                num_scalar_prefetch=0,
                grid=(grid_b,),
                in_specs=in_specs,
                out_specs=pl.BlockSpec((8, 128), lambda i: (i, 0)),
            ),
            compiler_params=pltpu.CompilerParams(
                dimension_semantics=(pltpu.CORE_PARALLEL,),
                vmem_limit_bytes=vmem_limit_bytes,
            ),
            cost_estimate=cost,
        )(anchor, positive, negative)
        partials = out.reshape(grid_b, 8, 128)[:, 0, 0]   # one f32 per grid step
        return jnp.sum(partials) * (1.0 / B)

    # Single-TC path (v5e / v6e; also correct on v7x): serial "arbitrary" grid,
    # the (1,1) output block is the accumulator, final mean emitted in-kernel.
    kernel = functools.partial(_triplet_acc_kernel, batch=B, tile_b=tile_b,
                               inv_b=1.0 / B)
    out = pl.pallas_call(
        kernel,
        out_shape=jax.ShapeDtypeStruct((1, 1), jnp.float32),
        grid_spec=pltpu.PrefetchScalarGridSpec(
            num_scalar_prefetch=0,
            grid=(grid_b,),
            in_specs=in_specs,
            out_specs=pl.BlockSpec((1, 1), lambda i: (0, 0)),
        ),
        compiler_params=pltpu.CompilerParams(
            dimension_semantics=("arbitrary",),
            vmem_limit_bytes=vmem_limit_bytes,
        ),
        cost_estimate=cost,
    )(anchor, positive, negative)
    return out[0, 0]


if __name__ == "__main__":
    key = jax.random.PRNGKey(0)
    k_a, k_p, k_n = jax.random.split(key, 3)

    # Small shapes consistent with the module: embedding_dim=128 (module default),
    # B=20 so small explicit tiles exercise multi-step grids with ragged last tiles.
    B, D = 20, 128

    def _unit(k):
        # Mimic the encoder output: F.normalize(..., p=2, dim=1) unit vectors.
        v = jax.random.normal(k, (B, D), dtype=jnp.float32)
        return v / jnp.linalg.norm(v, axis=-1, keepdims=True)

    anchor, positive, negative = _unit(k_a), _unit(k_p), _unit(k_n)

    def _ref_loss(a, p, n):
        a, p, n = (x.astype(jnp.float32) for x in (a, p, n))
        dp = jnp.sqrt(jnp.sum((a - p + EPS) ** 2, axis=-1))
        dn = jnp.sqrt(jnp.sum((a - n + EPS) ** 2, axis=-1))
        return jnp.mean(jnp.maximum(dp - dn + MARGIN, 0.0))

    # --- f32 path, explicit small tile: 3-step grid with a ragged last tile ---
    loss = triplet_margin_loss(anchor, positive, negative, tile_b=8)
    jax.block_until_ready(loss)
    ref = _ref_loss(anchor, positive, negative)
    assert jnp.allclose(loss, ref, rtol=1e-5, atol=1e-5), (loss, ref)

    # --- f32 path, auto tile (single full-batch tile) ---
    loss_auto = triplet_margin_loss(anchor, positive, negative)
    jax.block_until_ready(loss_auto)
    assert jnp.allclose(loss_auto, ref, rtol=1e-5, atol=1e-5), (loss_auto, ref)

    # --- bf16 storage path (primary config: halves HBM traffic). tile_b=16
    #     matches the native (16,128) bf16 tile and gives a 2-step ragged grid.
    a16 = anchor.astype(jnp.bfloat16)
    p16 = positive.astype(jnp.bfloat16)
    n16 = negative.astype(jnp.bfloat16)
    loss16 = triplet_margin_loss(a16, p16, n16, tile_b=16)
    jax.block_until_ready(loss16)
    ref16 = _ref_loss(a16, p16, n16)
    assert jnp.allclose(loss16, ref16, rtol=1e-3, atol=1e-3), (loss16, ref16)

    # NOTE: on v7x call triplet_margin_loss(..., core_parallel=True) to shard
    # the batch grid across the two TensorCores (not exercised here).

    print("KERNEL_OK")
</pallas_src>

<mosaic_0001>
module attributes {stable_mosaic.version = 11 : i64} {
  func.func @_triplet_acc_kernel(%arg0: i32, %arg1: memref<8x128xf32, #tpu.memory_space<vmem>>, %arg2: memref<8x128xf32, #tpu.memory_space<vmem>>, %arg3: memref<8x128xf32, #tpu.memory_space<vmem>>, %arg4: memref<1x1xf32, #tpu.memory_space<vmem>>) attributes {dimension_semantics = [#tpu.dimension_semantics<arbitrary>], iteration_bounds = array<i64: 3>, scalar_prefetch = 0 : i64, scratch_operands = 0 : i64, tpu.core_type = #tpu.core_type<tc>, window_params = [{transform_indices = @transform_0, window_bounds = array<i64: 8, 128>}, {transform_indices = @transform_1, window_bounds = array<i64: 8, 128>}, {transform_indices = @transform_2, window_bounds = array<i64: 8, 128>}, {pipeline_mode = #tpu.pipeline_mode<synchronous>, transform_indices = @transform_3, window_bounds = array<i64: 1, 1>}]} {
    %c0_i32 = arith.constant 0 : i32
    %0 = arith.cmpi eq, %arg0, %c0_i32 : i32
    %1 = arith.extui %0 : i1 to i32
    %c0_i32_0 = arith.constant 0 : i32
    %2 = arith.cmpi ne, %1, %c0_i32_0 : i32
    scf.if %2 {
      %cst_18 = arith.constant 0.000000e+00 : f32
      %41 = vector.broadcast %cst_18 : f32 to vector<1x1xf32>
      %c0_19 = arith.constant 0 : index
      %c0_20 = arith.constant 0 : index
      %42 = vector.load %arg4[%c0_19, %c0_20] : memref<1x1xf32, #tpu.memory_space<vmem>>, vector<1x1xf32>
      tpu.vector_store %arg4[%c0_19, %c0_20], %41 {strides = array<i32>} : memref<1x1xf32, #tpu.memory_space<vmem>>, vector<1x1xf32>,
    } else {
    }
    %c0 = arith.constant 0 : index
    %c0_1 = arith.constant 0 : index
    %3 = vector.load %arg4[%c0, %c0_1] : memref<1x1xf32, #tpu.memory_space<vmem>>, vector<1x1xf32>
    %c0_2 = arith.constant 0 : index
    %c0_3 = arith.constant 0 : index
    %4 = vector.load %arg1[%c0_2, %c0_3] : memref<8x128xf32, #tpu.memory_space<vmem>>, vector<8x128xf32>
    %c0_4 = arith.constant 0 : index
    %c0_5 = arith.constant 0 : index
    %5 = vector.load %arg2[%c0_4, %c0_5] : memref<8x128xf32, #tpu.memory_space<vmem>>, vector<8x128xf32>
    %c0_6 = arith.constant 0 : index
    %c0_7 = arith.constant 0 : index
    %6 = vector.load %arg3[%c0_6, %c0_7] : memref<8x128xf32, #tpu.memory_space<vmem>>, vector<8x128xf32>
    %7 = arith.subf %4, %5 : vector<8x128xf32>
    %cst = arith.constant 9.99999997E-7 : f32
    %8 = vector.broadcast %cst : f32 to vector<8x128xf32>
    %9 = arith.addf %7, %8 : vector<8x128xf32>
    %10 = arith.mulf %9, %9 : vector<8x128xf32>
    %cst_8 = arith.constant dense<0.000000e+00> : vector<8xf32>
    %11 = vector.multi_reduction <add>, %10, %cst_8 [1] : vector<8x128xf32> to vector<8xf32>
    %12 = vector.shape_cast %11 : vector<8xf32> to vector<8x1xf32>
    %13 = math.sqrt %12 : vector<8x1xf32>
    %14 = arith.subf %4, %6 : vector<8x128xf32>
    %cst_9 = arith.constant 9.99999997E-7 : f32
    %15 = vector.broadcast %cst_9 : f32 to vector<8x128xf32>
    %16 = arith.addf %14, %15 : vector<8x128xf32>
    %17 = arith.mulf %16, %16 : vector<8x128xf32>
    %cst_10 = arith.constant dense<0.000000e+00> : vector<8xf32>
    %18 = vector.multi_reduction <add>, %17, %cst_10 [1] : vector<8x128xf32> to vector<8xf32>
    %19 = vector.shape_cast %18 : vector<8xf32> to vector<8x1xf32>
    %20 = math.sqrt %19 : vector<8x1xf32>
    %21 = arith.subf %13, %20 : vector<8x1xf32>
    %cst_11 = arith.constant 1.000000e+00 : f32
    %22 = vector.broadcast %cst_11 : f32 to vector<8x1xf32>
    %23 = arith.addf %21, %22 : vector<8x1xf32>
    %cst_12 = arith.constant 0.000000e+00 : f32
    %24 = vector.broadcast %cst_12 : f32 to vector<8x1xf32>
    %25 = arith.maximumf %23, %24 : vector<8x1xf32>
    %c8_i32 = arith.constant 8 : i32
    %26 = arith.muli %arg0, %c8_i32 : i32
    %27 = tpu.iota {dimensions = array<i32: 0>} : vector<8x1xi32>
    %28 = vector.broadcast %26 : i32 to vector<8x1xi32>
    %29 = arith.addi %28, %27 : vector<8x1xi32>
    %c20_i32 = arith.constant 20 : i32
    %30 = vector.broadcast %c20_i32 : i32 to vector<8x1xi32>
    %31 = arith.cmpi slt, %29, %30 : vector<8x1xi32>
    %cst_13 = arith.constant 0.000000e+00 : f32
    %32 = vector.broadcast %cst_13 : f32 to vector<8x1xf32>
    %33 = arith.select %31, %25, %32 : vector<8x1xi1>, vector<8x1xf32>
    %cst_14 = arith.constant dense<0.000000e+00> : vector<1xf32>
    %34 = vector.multi_reduction <add>, %33, %cst_14 [0] : vector<8x1xf32> to vector<1xf32>
    %35 = vector.shape_cast %34 : vector<1xf32> to vector<1x1xf32>
    %36 = arith.addf %3, %35 : vector<1x1xf32>
    %c0_15 = arith.constant 0 : index
    %c0_16 = arith.constant 0 : index
    %37 = vector.load %arg4[%c0_15, %c0_16] : memref<1x1xf32, #tpu.memory_space<vmem>>, vector<1x1xf32>
    tpu.vector_store %arg4[%c0_15, %c0_16], %36 {strides = array<i32>} : memref<1x1xf32, #tpu.memory_space<vmem>>, vector<1x1xf32>,
    %c2_i32 = arith.constant 2 : i32
    %38 = arith.cmpi eq, %arg0, %c2_i32 : i32
    %39 = arith.extui %38 : i1 to i32
    %c0_i32_17 = arith.constant 0 : i32
    %40 = arith.cmpi ne, %39, %c0_i32_17 : i32
    scf.if %40 {
      %c0_18 = arith.constant 0 : index
      %c0_19 = arith.constant 0 : index
      %41 = vector.load %arg4[%c0_18, %c0_19] : memref<1x1xf32, #tpu.memory_space<vmem>>, vector<1x1xf32>
      %cst_20 = arith.constant 5.000000e-02 : f32
      %42 = vector.broadcast %cst_20 : f32 to vector<1x1xf32>
      %43 = arith.mulf %41, %42 : vector<1x1xf32>
      %c0_21 = arith.constant 0 : index
      %c0_22 = arith.constant 0 : index
      %44 = vector.load %arg4[%c0_21, %c0_22] : memref<1x1xf32, #tpu.memory_space<vmem>>, vector<1x1xf32>
      tpu.vector_store %arg4[%c0_21, %c0_22], %43 {strides = array<i32>} : memref<1x1xf32, #tpu.memory_space<vmem>>, vector<1x1xf32>,
    } else {
    }
    return
  }
  func.func @transform_0(%arg0: i32) -> (i32, i32) {
    %c0_i32 = arith.constant 0 : i32
    %c0_i32_0 = arith.constant 0 : i32
    return %arg0, %c0_i32 : i32, i32
  }
  func.func @transform_1(%arg0: i32) -> (i32, i32) {
    %c0_i32 = arith.constant 0 : i32
    %c0_i32_0 = arith.constant 0 : i32
    return %arg0, %c0_i32 : i32, i32
  }
  func.func @transform_2(%arg0: i32) -> (i32, i32) {
    %c0_i32 = arith.constant 0 : i32
    %c0_i32_0 = arith.constant 0 : i32
    return %arg0, %c0_i32 : i32, i32
  }
  func.func @transform_3(%arg0: i32) -> (i32, i32) {
    %c0_i32 = arith.constant 0 : i32
    %c0_i32_0 = arith.constant 0 : i32
    %c0_i32_1 = arith.constant 0 : i32
    return %c0_i32, %c0_i32_0 : i32, i32
  }
}

</mosaic_0001>

<llo_original>
// kernel: tpu_custom_call.1
$region0: #{tpu_custom_call.1}
  #allocation0 [shape = 'u32[]', space=smem, size = 0x4, offset = 0x4, fixed_abs, tag = 'smem constant byte address 0x4 - core index']
  #allocation1 [shape = 'u32[144,128]{1,0:T(1,128)}', space=vmem, size = 0x12000, scoped, tag = 'internal scratch']
  %s0 = inlined_call_operand.hbm [shape: f32[20,128], index: 0, kind: input, shape index: {}]
  %s1 = inlined_call_operand.hbm [shape: f32[20,128], index: 1, kind: input, shape index: {}]
  %s2 = inlined_call_operand.hbm [shape: f32[20,128], index: 2, kind: input, shape index: {}]
  %s3 = inlined_call_operand.hbm [shape: f32[1,1], index: 3, kind: output, shape index: {}]
  %s4 = sld [smem:[#allocation0]]
  $region65: #{tpu_custom_call.1} parent=0
    _
  %s6 = ssub.s32 1, %s4
  %s7 = scalar_select 0, %s6, %s4
  $region1: #{tpu_custom_call.1} parent=0
    #allocation2 [shape = 'u8[8192]{0}', space=vmem, size = 0x2000, scoped, tag = 'input window, operand 0']
    #allocation3 [shape = 's32[2]{0}', space=sflag, size = 0x8, scoped, tag = 'scoped memory for tpu_custom_call.1']
    #allocation4 [shape = 's32[2]{0}', space=sflag, size = 0x8, scoped, tag = 'scoped memory for tpu_custom_call.1']
    #allocation5 [shape = 'u8[8192]{0}', space=vmem, size = 0x2000, scoped, tag = 'input window, operand 1']
    #allocation6 [shape = 's32[2]{0}', space=sflag, size = 0x8, scoped, tag = 'scoped memory for tpu_custom_call.1']
    #allocation7 [shape = 'u8[8192]{0}', space=vmem, size = 0x2000, scoped, tag = 'input window, operand 2']
    #allocation8 [shape = 'u8[512]{0}', space=vmem, size = 0x400, scoped, tag = 'output window, operand 0, single buffered']
    %8 = vsyncpa [#allocation3], 0
    %s9 = scalar_lea.sflag [#allocation3], 1
    %10 = vsyncpa %s9, 0
    %11 = vsyncpa [#allocation6], 0
    %s12 = scalar_lea.sflag [#allocation6], 1
    %13 = vsyncpa %s12, 0
    %14 = vsyncpa [#allocation4], 0
    loop: start=0, step=1, limit=5
    $region2: #{tpu_custom_call.1} parent=1 // loop_pre_header
      _
    $region3: #{tpu_custom_call.1} parent=1 // loop_header
      %s16 = sphi 0, %s20
      %p17 = scmp.ge.s32.totalorder %s16, 5
      %s26 = sphi 0, %s28
      %s29 = sphi 0, %s26
      %s30 = sphi 0, %s29
      %s46 = sphi 0, %s30
      %s52 = sphi 0, %s54
      %s55 = sphi 0, %s52
      %s56 = sphi 0, %s55
      %s72 = sphi 0, %s56
      %s78 = sphi 0, %s80
      %s81 = sphi 0, %s78
      %s82 = sphi 0, %s81
      %s98 = sphi 0, %s82
      %s102 = sphi 0, %s102
      %s104 = sphi 0, %s102
      %s105 = sphi 0, %s104
      %s119 = sphi 0, %s105
    $region4: #{tpu_custom_call.1} parent=1 // loop_header_branch
      %19 = sbr.rel (%p17) target = $region8
    $region5: #{tpu_custom_call.1} parent=1 // loop_body
      %s21 = ssub.s32 %s16, 1
      %s22 = ssub.s32 %s16, 2
      %s23 = sadd.s32 %s16, 1
      %s24 = ssub.s32 %s16, %s23
      %p25 = scmp.eq.s32.totalorder %s24, 0
      %s27 = sadd.s32 %s26, 1
      %s28 = scalar_select %p25, %s26, %s27
      %p31 = pneg %p25
      %p32 = scmp.eq.s32.totalorder %s16, 2
      %p33 = por %p31, %p32
      %p34 = scmp.ne.s32.totalorder %s26, %s29
      %p35 = scmp.eq.s32.totalorder %s16, 0
      %p36 = por %p34, %p35
      %p37 = scmp.ne.s32.totalorder %s26, %s29
      %p38 = scmp.eq.s32.totalorder %s21, 2
      %p39 = por %p37, %p38
      %p40 = scmp.ne.s32.totalorder %s29, %s30
      %p41 = scmp.eq.s32.totalorder %s21, 0
      %p42 = por %p40, %p41
      %p43 = scmp.ne.s32.totalorder %s29, %s30
      %p44 = scmp.eq.s32.totalorder %s22, 2
      %p45 = por %p43, %p44
      %p47 = scmp.ne.s32.totalorder %s30, %s46
      %p48 = scmp.eq.s32.totalorder %s22, 0
      %p49 = por %p47, %p48
      %s50 = ssub.s32 %s16, %s23
      %p51 = scmp.eq.s32.totalorder %s50, 0
      %s53 = sadd.s32 %s52, 1
      %s54 = scalar_select %p51, %s52, %s53
      %p57 = pneg %p51
      %p58 = scmp.eq.s32.totalorder %s16, 2
      %p59 = por %p57, %p58
      %p60 = scmp.ne.s32.totalorder %s52, %s55
      %p61 = scmp.eq.s32.totalorder %s16, 0
      %p62 = por %p60, %p61
      %p63 = scmp.ne.s32.totalorder %s52, %s55
      %p64 = scmp.eq.s32.totalorder %s21, 2
      %p65 = por %p63, %p64
      %p66 = scmp.ne.s32.totalorder %s55, %s56
      %p67 = scmp.eq.s32.totalorder %s21, 0
      %p68 = por %p66, %p67
      %p69 = scmp.ne.s32.totalorder %s55, %s56
      %p70 = scmp.eq.s32.totalorder %s22, 2
      %p71 = por %p69, %p70
      %p73 = scmp.ne.s32.totalorder %s56, %s72
      %p74 = scmp.eq.s32.totalorder %s22, 0
      %p75 = por %p73, %p74
      %s76 = ssub.s32 %s16, %s23
      %p77 = scmp.eq.s32.totalorder %s76, 0
      %s79 = sadd.s32 %s78, 1
      %s80 = scalar_select %p77, %s78, %s79
      %p83 = pneg %p77
      %p84 = scmp.eq.s32.totalorder %s16, 2
      %p85 = por %p83, %p84
      %p86 = scmp.ne.s32.totalorder %s78, %s81
      %p87 = scmp.eq.s32.totalorder %s16, 0
      %p88 = por %p86, %p87
      %p89 = scmp.ne.s32.totalorder %s78, %s81
      %p90 = scmp.eq.s32.totalorder %s21, 2
      %p91 = por %p89, %p90
      %p92 = scmp.ne.s32.totalorder %s81, %s82
      %p93 = scmp.eq.s32.totalorder %s21, 0
      %p94 = por %p92, %p93
      %p95 = scmp.ne.s32.totalorder %s81, %s82
      %p96 = scmp.eq.s32.totalorder %s22, 2
      %p97 = por %p95, %p96
      %p99 = scmp.ne.s32.totalorder %s82, %s98
      %p100 = scmp.eq.s32.totalorder %s22, 0
      %p101 = por %p99, %p100
      %s103 = sadd.s32 %s102, 1
      %p106 = scmp.eq.s32.totalorder %s16, 2
      %p107 = scmp.ne.s32.totalorder %s102, %s104
      %p108 = scmp.eq.s32.totalorder %s16, 0
      %p109 = por %p107, %p108
      %p110 = scmp.ne.s32.totalorder %s102, %s104
      %p111 = scmp.eq.s32.totalorder %s21, 2
      %p112 = por %p110, %p111
      %p113 = scmp.ne.s32.totalorder %s104, %s105
      %p114 = scmp.eq.s32.totalorder %s21, 0
      %p115 = por %p113, %p114
      %p116 = scmp.ne.s32.totalorder %s104, %s105
      %p117 = scmp.eq.s32.totalorder %s22, 2
      %p118 = por %p116, %p117
      %p120 = scmp.ne.s32.totalorder %s105, %s119
      %p121 = scmp.eq.s32.totalorder %s22, 0
      %p122 = por %p120, %p121
      %p123 = scmp.le.s32.totalorder 1, %s16
      %p124 = scmp.lt.s32.totalorder %s16, 4
      %p125 = pnand %p123, %p124
      %p126 = pneg %p125
      // Predicated region
      $region9: #{tpu_custom_call.1} parent=5 // pred_check
        _
      $region10: #{tpu_custom_call.1} parent=5 // pred_check_branch
        %128 = sbr.rel (%p125) target = $region12
      $region11: #{tpu_custom_call.1} parent=5 // pred_region
        %s129 = ssub.s32 %s16, 1
      $region12: #{tpu_custom_call.1} parent=5 // pred_fallthru
        _
      %p130 = scmp.lt.s32.totalorder %s16, 3
      // Predicated region
      $region13: #{tpu_custom_call.1} parent=5 // pred_check
        %p131 = pneg %p130
      $region14: #{tpu_custom_call.1} parent=5 // pred_check_branch
        %133 = sbr.rel (%p131) target = $region16
      $region15: #{tpu_custom_call.1} parent=5 // pred_region
        // Predicated region
        $region17: #{tpu_custom_call.1} parent=15 // pred_check
          %p134 = pneg %p36
        $region18: #{tpu_custom_call.1} parent=15 // pred_check_branch
          %136 = sbr.rel (%p134) target = $region20
        $region19: #{tpu_custom_call.1} parent=15 // pred_region
          %s137 = sand.u32 %s26, 1
          %s138 = scalar_lea.sflag [#allocation3], %s137
          %s139 = sand.u32 %s26, 1
          %s140 = smul.addr %s139, 8
          %s141 = scalar_lea.vmem [#allocation2], %s140
          %s143 = ssub.s32 128, 128
          %144 = vsyncadd %s138, %s143
          %s145 = smul.addr %s16, 128
          %s146 = scalar_lea.hbm %s0, %s145
          %s148 = sshll.u32 %s141, 4
          %s149 = int_to_ptr.vmem [resolvable:$true] %s148
          %151 = dma.hbm_to_vmem [thread:$0]  %s146, 128, %s149, %s138
        $region20: #{tpu_custom_call.1} parent=15 // pred_fallthru
          _
        // Predicated region
        $region21: #{tpu_custom_call.1} parent=15 // pred_check
          %p152 = pneg %p62
        $region22: #{tpu_custom_call.1} parent=15 // pred_check_branch
          %154 = sbr.rel (%p152) target = $region24
        $region23: #{tpu_custom_call.1} parent=15 // pred_region
          %s155 = sand.u32 %s16, 1
          %s156 = scalar_lea.sflag [#allocation6], %s155
          %s157 = sand.u32 %s52, 1
          %s158 = smul.addr %s157, 8
          %s159 = scalar_lea.vmem [#allocation5], %s158
          %s161 = ssub.s32 128, 128
          %162 = vsyncadd %s156, %s161
          %s163 = smul.addr %s16, 128
          %s164 = scalar_lea.hbm %s1, %s163
          %s166 = sshll.u32 %s159, 4
          %s167 = int_to_ptr.vmem [resolvable:$true] %s166
          %169 = dma.hbm_to_vmem [thread:$0]  %s164, 128, %s167, %s156
        $region24: #{tpu_custom_call.1} parent=15 // pred_fallthru
          _
        // Predicated region
        $region25: #{tpu_custom_call.1} parent=15 // pred_check
          %p170 = pneg %p88
        $region26: #{tpu_custom_call.1} parent=15 // pred_check_branch
          %172 = sbr.rel (%p170) target = $region28
        $region27: #{tpu_custom_call.1} parent=15 // pred_region
          %s173 = sand.u32 %s16, 1
          %s174 = scalar_lea.sflag [#allocation6], %s173
          %s175 = sand.u32 %s78, 1
          %s176 = smul.addr %s175, 8
          %s177 = scalar_lea.vmem [#allocation7], %s176
          %s179 = ssub.s32 128, 128
          %180 = vsyncadd %s174, %s179
          %s181 = smul.addr %s16, 128
          %s182 = scalar_lea.hbm %s2, %s181
          %s184 = sshll.u32 %s177, 4
          %s185 = int_to_ptr.vmem [resolvable:$true] %s184
          %187 = dma.hbm_to_vmem [thread:$0]  %s182, 128, %s185, %s174
        $region28: #{tpu_custom_call.1} parent=15 // pred_fallthru
          _
      $region16: #{tpu_custom_call.1} parent=5 // pred_fallthru
        _
      %p188 = scmp.le.s32.totalorder 1, %s16
      %p189 = scmp.lt.s32.totalorder %s16, 4
      %p190 = pnand %p188, %p189
      %p191 = pneg %p190
      // Predicated region
      $region29: #{tpu_custom_call.1} parent=5 // pred_check
        _
      $region30: #{tpu_custom_call.1} parent=5 // pred_check_branch
        %193 = sbr.rel (%p190) target = $region32
      $region31: #{tpu_custom_call.1} parent=5 // pred_region
        %s194 = ssub.s32 %s16, 1
        %s195 = sand.u32 %s29, 1
        %s196 = scalar_lea.sflag [#allocation3], %s195
        %s197 = sand.u32 %s29, 1
        %s198 = smul.addr %s197, 8
        %s199 = scalar_lea.vmem [#allocation2], %s198
        // Predicated region
        $region33: #{tpu_custom_call.1} parent=31 // pred_check
          %p200 = pneg %p42
        $region34: #{tpu_custom_call.1} parent=31 // pred_check_branch
          %202 = sbr.rel (%p200) target = $region36
        $region35: #{tpu_custom_call.1} parent=31 // pred_region
          %203 = dma.done %s196, 128
        $region36: #{tpu_custom_call.1} parent=31 // pred_fallthru
          _
        %s204 = sand.u32 %s21, 1
        %s205 = scalar_lea.sflag [#allocation6], %s204
        %s206 = sand.u32 %s55, 1
        %s207 = smul.addr %s206, 8
        %s208 = scalar_lea.vmem [#allocation5], %s207
        // Predicated region
        $region37: #{tpu_custom_call.1} parent=31 // pred_check
          %p209 = pneg %p68
        $region38: #{tpu_custom_call.1} parent=31 // pred_check_branch
          %211 = sbr.rel (%p209) target = $region40
        $region39: #{tpu_custom_call.1} parent=31 // pred_region
          %212 = dma.done %s205, 128
        $region40: #{tpu_custom_call.1} parent=31 // pred_fallthru
          _
        %s213 = sand.u32 %s21, 1
        %s214 = scalar_lea.sflag [#allocation6], %s213
        %s215 = sand.u32 %s81, 1
        %s216 = smul.addr %s215, 8
        %s217 = scalar_lea.vmem [#allocation7], %s216
        // Predicated region
        $region41: #{tpu_custom_call.1} parent=31 // pred_check
          %p218 = pneg %p94
        $region42: #{tpu_custom_call.1} parent=31 // pred_check_branch
          %220 = sbr.rel (%p218) target = $region44
        $region43: #{tpu_custom_call.1} parent=31 // pred_region
          %221 = dma.done %s214, 128
        $region44: #{tpu_custom_call.1} parent=31 // pred_fallthru
          _
        %s222 = sand.u32 %s29, 1
        %s223 = scalar_lea.sflag [#allocation3], %s222
        %s224 = sand.u32 %s29, 1
        %s225 = smul.addr %s224, 8
        %s226 = scalar_lea.vmem [#allocation2], %s225
        %p227 = pneg %p42
        %p228 = pneg %p39
        %s229 = sand.u32 %s21, 1
        %s230 = scalar_lea.sflag [#allocation6], %s229
        %s231 = sand.u32 %s55, 1
        %s232 = smul.addr %s231, 8
        %s233 = scalar_lea.vmem [#allocation5], %s232
        %p234 = pneg %p68
        %p235 = pneg %p65
        %s236 = sand.u32 %s21, 1
        %s237 = scalar_lea.sflag [#allocation6], %s236
        %s238 = sand.u32 %s81, 1
        %s239 = smul.addr %s238, 8
        %s240 = scalar_lea.vmem [#allocation7], %s239
        %p241 = pneg %p94
        %p242 = pneg %p91
        %p243 = pneg %p115
        %p244 = pneg %p112
        %p245 = scmp.eq.s32.totalorder %s21, 0
        // Predicated region
        $region45: #{tpu_custom_call.1} parent=31 // pred_check
          %p246 = pneg %p245
        $region46: #{tpu_custom_call.1} parent=31 // pred_check_branch
          %248 = sbr.rel (%p246) target = $region48
        $region47: #{tpu_custom_call.1} parent=31 // pred_region
          %vm249 = vcmask 0
          %250 = vst.msk [vmem:[#allocation8] sm:$0x1] %vm249, 0.0
        $region48: #{tpu_custom_call.1} parent=31 // pred_fallthru
          _
        %v251 = vld [vmem:[#allocation8] sm:$0x1]
        %v252 = vld [vmem:[%s199] sm:$0xff]
        %v253 = vld [vmem:[%s208] sm:$0xff]
        %v254 = vld [vmem:[%s217] sm:$0xff]
        %v255 = vsub.f32 %v252, %v253
        %v256 = vadd.f32 %v255, 1e-06
        %v257 = vmul.f32 %v256, %v256
        %258 = vadd.xlane.f32.xlu0 %v257
        %v259 = vpop.xlane.xlu0 %258
        %v260 = vrsqrt.pop %v259
        %v261 = vmul.f32 %v259, %v260
        %vm262 = vcmp.eq.f32.partialorder %v259, inf
        %v263 = vsel %vm262, %v259, %v261
        %vm264 = vcmp.eq.f32.partialorder %v259, 0.0
        %v265 = vand.u32 %v259, 2147483648
        %v266 = vsel %vm264, %v265, %v263
        %v267 = vsub.f32 %v252, %v254
        %v268 = vadd.f32 %v267, 1e-06
        %v269 = vmul.f32 %v268, %v268
        %270 = vadd.xlane.f32.xlu0 %v269
        %v271 = vpop.xlane.xlu0 %270
        %v272 = vrsqrt.pop %v271
        %v273 = vmul.f32 %v271, %v272
        %vm274 = vcmp.eq.f32.partialorder %v271, inf
        %v275 = vsel %vm274, %v271, %v273
        %vm276 = vcmp.eq.f32.partialorder %v271, 0.0
        %v277 = vand.u32 %v271, 2147483648
        %v278 = vsel %vm276, %v277, %v275
        %v279 = vsub.f32 %v266, %v278
        %v280 = vadd.f32 %v279, 1.0
        %v281 = vmax.f32 %v280, 0.0
        %s282 = smul.u32 %s21, 8
        %v283 = vlaneseq
        %v284 = vshrl.u32 %v283, 7
        %v285 = vstv %s282
        %v286 = vadd.s32 %v285, %v284
        %vm287 = vcmp.lt.s32.totalorder %v286, 20
        %v288 = vsel %vm287, %v281, 0.0
        %v289 = vrot.slane %v288, 4
        %v290 = vadd.f32 %v288, %v289
        %v291 = vrot.slane %v290, 2
        %v292 = vadd.f32 %v290, %v291
        %v293 = vrot.slane %v292, 1
        %v294 = vadd.f32 %v292, %v293
        %v295 = vadd.f32 %v251, %v294
        %vm296 = vcmask 0
        %297 = vst.msk [vmem:[#allocation8] sm:$0x1] %vm296, %v295
        %p298 = scmp.eq.s32.totalorder %s21, 2
        // Predicated region
        $region49: #{tpu_custom_call.1} parent=31 // pred_check
          %p299 = pneg %p298
        $region50: #{tpu_custom_call.1} parent=31 // pred_check_branch
          %301 = sbr.rel (%p299) target = $region52
        $region51: #{tpu_custom_call.1} parent=31 // pred_region
          %v302 = vld [vmem:[#allocation8] sm:$0x1]
          %v303 = vmul.f32 %v302, 0.05
          %304 = vst.msk [vmem:[#allocation8] sm:$0x1] %vm296, %v303
        $region52: #{tpu_custom_call.1} parent=31 // pred_fallthru
          _
        // Predicated region
        $region53: #{tpu_custom_call.1} parent=31 // pred_check
          %p305 = pneg %p112
        $region54: #{tpu_custom_call.1} parent=31 // pred_check_branch
          %307 = sbr.rel (%p305) target = $region56
        $region55: #{tpu_custom_call.1} parent=31 // pred_region
          %s309 = ssub.s32 16, 16
          %310 = vsyncadd [#allocation4], %s309
          %s312 = sshll.u32 [#allocation8], 4
          %s313 = int_to_ptr.vmem [resolvable:$true] %s312
          %315 = dma.vmem_to_hbm [thread:$0]  %s313, 16, %s3, [#allocation4]
        $region56: #{tpu_custom_call.1} parent=31 // pred_fallthru
          _
        // Predicated region
        $region57: #{tpu_custom_call.1} parent=31 // pred_check
          %p316 = pneg %p112
        $region58: #{tpu_custom_call.1} parent=31 // pred_check_branch
          %318 = sbr.rel (%p316) target = $region60
        $region59: #{tpu_custom_call.1} parent=31 // pred_region
          %319 = dma.done [#allocation4], 16
        $region60: #{tpu_custom_call.1} parent=31 // pred_fallthru
          _
      $region32: #{tpu_custom_call.1} parent=5 // pred_fallthru
        _
      %p320 = scmp.le.s32.totalorder 2, %s16
      // Predicated region
      $region61: #{tpu_custom_call.1} parent=5 // pred_check
        %p321 = pneg %p320
      $region62: #{tpu_custom_call.1} parent=5 // pred_check_branch
        %323 = sbr.rel (%p321) target = $region64
      $region63: #{tpu_custom_call.1} parent=5 // pred_region
        %s324 = ssub.s32 %s16, 2
      $region64: #{tpu_custom_call.1} parent=5 // pred_fallthru
        _
    $region6: #{tpu_custom_call.1} parent=1 // loop_footer
      %s20 = sadd.s32 1, %s16
    $region7: #{tpu_custom_call.1} parent=1 // loop_footer_branch
      %15 = sbr.rel target = $region3
    $region8: #{tpu_custom_call.1} parent=1 // loop_exit
      _
    %325 = vsyncpa [#allocation3], 1
    %s326 = scalar_lea.sflag [#allocation3], 1
    %327 = vsyncpa %s326, 1
    %328 = vsyncpa [#allocation6], 1
    %s329 = scalar_lea.sflag [#allocation6], 1
    %330 = vsyncpa %s329, 1
    %331 = vsyncpa [#allocation4], 1
    %s332 = scalar_lea.sflag [#allocation4], 1
    %333 = vsyncpa %s332, 1

</llo_original>
